<compile_context>
chip_gen: v6e
topology: v6e:2x2x1
jax: 0.10.0
libtpu: 0.0.40
codegen_flags: <defaults>
</compile_context>

<pallas_src>
import functools

import jax
import jax.numpy as jnp
from jax import lax
from jax.experimental import pallas as pl
from jax.experimental.pallas import tpu as pltpu

BETA = 0.8
EPS = 1e-07  # only used by the pure-JAX reference (kernel uses log-space log-softmax)


def _pick_tile_batch(n, c, in_dtype, budget_bytes=12 * 1024 * 1024, max_tile=1024):
    """Largest row-tile that keeps double-buffered input + f32 temps under budget."""
    in_bytes = jnp.dtype(in_dtype).itemsize
    # 2x double-buffered logits block + ~6 f32 (TB, C) temporaries + target/out slack.
    per_row = 2 * c * in_bytes + 6 * c * 4 + 64
    tb = max(8, budget_bytes // per_row)
    tb = min(tb, max_tile)
    n_pad8 = ((n + 7) // 8) * 8
    tb = min(tb, n_pad8)
    if tb >= 128:
        tb = (tb // 128) * 128          # lane-dense / relayout-friendly tiles
    else:
        tb = ((tb + 7) // 8) * 8        # sublane multiple
    return int(max(tb, 8))


def _bootstrap_loss_kernel(logits_ref, target_ref, out_ref, *, beta, n_total,
                           tile_batch, per_row):
    """One grid step = one (tile_batch, C) row-tile; writes its own output block."""
    i = pl.program_id(0)

    x = logits_ref[...].astype(jnp.float32)           # (TB, C), single upcast per tile
    t = target_ref[...]                               # (TB, 1) int32

    # Row-validity mask for the (possibly padded) final tile (grid = cdiv(N, TB)).
    rows = lax.broadcasted_iota(jnp.int32, (tile_batch, 1), 0) + i * tile_batch
    valid = rows < n_total                             # (TB, 1) bool

    # log-softmax in log space: one exp per element; log / reciprocal per ROW only.
    m = jnp.max(x, axis=1, keepdims=True)              # (TB, 1)
    e = jnp.exp(x - m)                                 # (TB, C)  EUP
    s = jnp.sum(e, axis=1, keepdims=True)              # (TB, 1)  XLU lane reduce
    log_prob = (x - m) - jnp.log(s)                    # (TB, C); per-row log only
    prob = e * pl.reciprocal(s, approx=True)           # (TB, C); per-row EUP vrcp

    # one_hot == torch scatter(1, target, 1.0), built from a lane iota.
    classes = lax.broadcasted_iota(jnp.int32, x.shape, 1)
    one_hot = (classes == t).astype(jnp.float32)       # (TB, C)

    q = beta * one_hot + (1.0 - beta) * prob
    contrib = jnp.where(valid, -q * log_prob, 0.0)     # (TB, C); padded rows -> 0

    if per_row:
        # Per-sample loss, (rows, 1) layout (same pattern as flash-attention LSE).
        out_ref[...] = jnp.sum(contrib, axis=1, keepdims=True)   # (TB, 1)
    else:
        # Lane-dense per-tile per-class partial sums; final reduce in the wrapper.
        out_ref[...] = jnp.sum(contrib, axis=0, keepdims=True)   # (1, C)


def bootstrapping_loss(logits, target, *, beta=BETA, reduction="mean",
                       tile_batch=None):
    """logits: (N, C) float32/bfloat16; target: (N,) integer class ids."""
    if reduction not in ("mean", "sum", "none"):
        raise ValueError(f"unsupported reduction: {reduction!r}")
    n, c = logits.shape
    if tile_batch is None:
        tile_batch = _pick_tile_batch(n, c, logits.dtype)
    num_tiles = -(-n // tile_batch)
    target2d = target.astype(jnp.int32).reshape(n, 1)
    per_row = reduction == "none"

    kernel = functools.partial(
        _bootstrap_loss_kernel, beta=float(beta), n_total=n,
        tile_batch=tile_batch, per_row=per_row)

    if per_row:
        out_shape = jax.ShapeDtypeStruct((num_tiles * tile_batch, 1), jnp.float32)
        out_specs = pl.BlockSpec((tile_batch, 1), lambda i: (i, 0))
    else:
        out_shape = jax.ShapeDtypeStruct((num_tiles, c), jnp.float32)
        out_specs = pl.BlockSpec((1, c), lambda i: (i, 0))

    out = pl.pallas_call(
        kernel,
        out_shape=out_shape,
        grid_spec=pltpu.PrefetchScalarGridSpec(
            num_scalar_prefetch=0,
            grid=(num_tiles,),
            in_specs=[
                pl.BlockSpec((tile_batch, c), lambda i: (i, 0)),
                pl.BlockSpec((tile_batch, 1), lambda i: (i, 0)),
            ],
            out_specs=out_specs,
        ),
        compiler_params=pltpu.CompilerParams(
            # Independent per-tile outputs -> safe to shard across v7x's 2 TCs.
            dimension_semantics=("parallel",),
            vmem_limit_bytes=32 * 1024 * 1024,
        ),
    )(logits, target2d)

    if reduction == "none":
        return out[:n, 0]
    total = jnp.sum(out)
    if reduction == "mean":
        return total / n
    return total


def _reference(logits, target, beta=BETA, reduction="mean"):
    prob = jax.nn.softmax(logits.astype(jnp.float32), axis=1)
    one_hot = jax.nn.one_hot(target, logits.shape[1], dtype=jnp.float32)
    q = beta * one_hot + (1.0 - beta) * prob
    loss = jnp.sum(-q * jnp.log(prob + EPS), axis=1)
    if reduction == "mean":
        return jnp.mean(loss)
    if reduction == "sum":
        return jnp.sum(loss)
    return loss


if __name__ == "__main__":
    key = jax.random.PRNGKey(0)
    k1, k2, k3, k4 = jax.random.split(key, 4)

    # --- Test 1: small single-tile case, reduction='mean' (module default) -----
    N1, C1 = 16, 32
    logits1 = jax.random.normal(k1, (N1, C1), dtype=jnp.float32)
    target1 = jax.random.randint(k2, (N1,), 0, C1, dtype=jnp.int32)
    out1 = jax.block_until_ready(bootstrapping_loss(logits1, target1, reduction="mean"))
    ref1 = _reference(logits1, target1, reduction="mean")
    # Tolerance covers the documented deviations: dropped +1e-7 inside the log
    # (log-space log-softmax) and approx per-row reciprocal.
    assert jnp.allclose(out1, ref1, atol=1e-3, rtol=1e-3), (out1, ref1)

    # --- Test 2: multi-tile grid with ragged final tile, reduction='none' ------
    N2, C2 = 300, 40
    logits2 = jax.random.normal(k3, (N2, C2), dtype=jnp.float32)
    target2 = jax.random.randint(k4, (N2,), 0, C2, dtype=jnp.int32)
    out2 = jax.block_until_ready(bootstrapping_loss(logits2, target2, reduction="none"))
    ref2 = _reference(logits2, target2, reduction="none")
    assert out2.shape == (N2,)
    assert jnp.allclose(out2, ref2, atol=2e-3, rtol=1e-3), float(jnp.max(jnp.abs(out2 - ref2)))

    # --- Test 3: bf16 logits (half the HBM reads), reduction='sum' -------------
    out3 = jax.block_until_ready(
        bootstrapping_loss(logits2.astype(jnp.bfloat16), target2, reduction="sum"))
    ref3 = _reference(logits2.astype(jnp.bfloat16), target2, reduction="sum")
    assert jnp.allclose(out3, ref3, atol=1e-1, rtol=1e-3), (out3, ref3)

    print("KERNEL_OK")
</pallas_src>

<mosaic_0001>
module attributes {stable_mosaic.version = 11 : i64} {
  func.func @_bootstrap_loss_kernel(%arg0: i32, %arg1: memref<16x32xf32, #tpu.memory_space<vmem>>, %arg2: memref<16x1xi32, #tpu.memory_space<vmem>>, %arg3: memref<1x32xf32, #tpu.memory_space<vmem>>) attributes {dimension_semantics = [#tpu.dimension_semantics<parallel>], iteration_bounds = array<i64: 1>, scalar_prefetch = 0 : i64, scratch_operands = 0 : i64, tpu.core_type = #tpu.core_type<tc>, window_params = [{transform_indices = @transform_0, window_bounds = array<i64: 16, 32>}, {transform_indices = @transform_1, window_bounds = array<i64: 16, 1>}, {transform_indices = @transform_2, window_bounds = array<i64: 1, 32>}]} {
    %c0 = arith.constant 0 : index
    %c0_0 = arith.constant 0 : index
    %0 = vector.load %arg1[%c0, %c0_0] : memref<16x32xf32, #tpu.memory_space<vmem>>, vector<16x32xf32>
    %c0_1 = arith.constant 0 : index
    %c0_2 = arith.constant 0 : index
    %1 = vector.load %arg2[%c0_1, %c0_2] : memref<16x1xi32, #tpu.memory_space<vmem>>, vector<16x1xi32>
    %2 = tpu.iota {dimensions = array<i32: 0>} : vector<16x1xi32>
    %c16_i32 = arith.constant 16 : i32
    %3 = arith.muli %arg0, %c16_i32 : i32
    %4 = vector.broadcast %3 : i32 to vector<16x1xi32>
    %5 = arith.addi %2, %4 : vector<16x1xi32>
    %c16_i32_3 = arith.constant 16 : i32
    %6 = vector.broadcast %c16_i32_3 : i32 to vector<16x1xi32>
    %7 = arith.cmpi slt, %5, %6 : vector<16x1xi32>
    %cst = arith.constant dense<0xFF800000> : vector<16xf32>
    %8 = vector.multi_reduction <maximumf>, %0, %cst [1] : vector<16x32xf32> to vector<16xf32>
    %9 = vector.shape_cast %8 : vector<16xf32> to vector<16x1xf32>
    %10 = vector.broadcast %9 : vector<16x1xf32> to vector<16x32xf32>
    %11 = arith.subf %0, %10 : vector<16x32xf32>
    %12 = math.exp %11 : vector<16x32xf32>
    %cst_4 = arith.constant dense<0.000000e+00> : vector<16xf32>
    %13 = vector.multi_reduction <add>, %12, %cst_4 [1] : vector<16x32xf32> to vector<16xf32>
    %14 = vector.shape_cast %13 : vector<16xf32> to vector<16x1xf32>
    %15 = vector.broadcast %9 : vector<16x1xf32> to vector<16x32xf32>
    %16 = arith.subf %0, %15 : vector<16x32xf32>
    %17 = math.log %14 : vector<16x1xf32>
    %18 = vector.broadcast %17 : vector<16x1xf32> to vector<16x32xf32>
    %19 = arith.subf %16, %18 : vector<16x32xf32>
    %20 = tpu.reciprocal %14 {approx = true} : vector<16x1xf32> -> vector<16x1xf32>
    %21 = vector.broadcast %20 : vector<16x1xf32> to vector<16x32xf32>
    %22 = arith.mulf %12, %21 : vector<16x32xf32>
    %23 = tpu.iota {dimensions = array<i32: 1>} : vector<16x32xi32>
    %24 = vector.broadcast %1 : vector<16x1xi32> to vector<16x32xi32>
    %25 = arith.cmpi eq, %23, %24 : vector<16x32xi32>
    %26 = arith.extui %25 : vector<16x32xi1> to vector<16x32xi32>
    %27 = arith.sitofp %26 : vector<16x32xi32> to vector<16x32xf32>
    %cst_5 = arith.constant 8.000000e-01 : f32
    %28 = vector.broadcast %cst_5 : f32 to vector<16x32xf32>
    %29 = arith.mulf %28, %27 : vector<16x32xf32>
    %cst_6 = arith.constant 2.000000e-01 : f32
    %30 = vector.broadcast %cst_6 : f32 to vector<16x32xf32>
    %31 = arith.mulf %30, %22 : vector<16x32xf32>
    %32 = arith.addf %29, %31 : vector<16x32xf32>
    %cst_7 = arith.constant 0.000000e+00 : f32
    %33 = vector.broadcast %cst_7 : f32 to vector<16x32xf32>
    %34 = arith.subf %33, %32 : vector<16x32xf32>
    %35 = arith.mulf %34, %19 : vector<16x32xf32>
    %cst_8 = arith.constant 0.000000e+00 : f32
    %36 = vector.shape_cast %7 : vector<16x1xi1> to vector<16x1xi1>
    %37 = vector.broadcast %36 : vector<16x1xi1> to vector<16x32xi1>
    %38 = vector.broadcast %cst_8 : f32 to vector<16x32xf32>
    %39 = arith.select %37, %35, %38 : vector<16x32xi1>, vector<16x32xf32>
    %cst_9 = arith.constant dense<0.000000e+00> : vector<32xf32>
    %40 = vector.multi_reduction <add>, %39, %cst_9 [0] : vector<16x32xf32> to vector<32xf32>
    %41 = vector.shape_cast %40 : vector<32xf32> to vector<1x32xf32>
    %c0_10 = arith.constant 0 : index
    %c0_11 = arith.constant 0 : index
    %42 = vector.load %arg3[%c0_10, %c0_11] : memref<1x32xf32, #tpu.memory_space<vmem>>, vector<1x32xf32>
    tpu.vector_store %arg3[%c0_10, %c0_11], %41 {strides = array<i32>} : memref<1x32xf32, #tpu.memory_space<vmem>>, vector<1x32xf32>,
    return
  }
  func.func @transform_0(%arg0: i32) -> (i32, i32) {
    %c0_i32 = arith.constant 0 : i32
    %c0_i32_0 = arith.constant 0 : i32
    return %arg0, %c0_i32 : i32, i32
  }
  func.func @transform_1(%arg0: i32) -> (i32, i32) {
    %c0_i32 = arith.constant 0 : i32
    %c0_i32_0 = arith.constant 0 : i32
    return %arg0, %c0_i32 : i32, i32
  }
  func.func @transform_2(%arg0: i32) -> (i32, i32) {
    %c0_i32 = arith.constant 0 : i32
    %c0_i32_0 = arith.constant 0 : i32
    return %arg0, %c0_i32 : i32, i32
  }
}

</mosaic_0001>

<llo_original>
// kernel: tpu_custom_call.1
$region0: #{tpu_custom_call.1}
  #allocation0 [shape = 'u32[]', space=smem, size = 0x4, offset = 0x4, fixed_abs, tag = 'smem constant byte address 0x4 - core index']
  #allocation1 [shape = 'u32[144,128]{1,0:T(1,128)}', space=vmem, size = 0x12000, scoped, tag = 'internal scratch']
  %s0 = inlined_call_operand.vmem [shape: f32[16,32], index: 0, kind: input, shape index: {}]
  %s1 = inlined_call_operand.vmem [shape: s32[16,1], index: 1, kind: input, shape index: {}]
  %s2 = inlined_call_operand.hbm [shape: f32[1,32], index: 2, kind: output, shape index: {}]
  %s3 = sld [smem:[#allocation0]]
  $region18: #{tpu_custom_call.1} parent=0
    _
  %s5 = ssub.s32 1, %s3
  %s6 = scalar_select 0, %s5, %s3
  $region1: #{tpu_custom_call.1} parent=0
    #allocation2 [shape = 'u8[512]{0}', space=vmem, size = 0x400, scoped, tag = 'output window, operand 0, single buffered']
    #allocation3 [shape = 's32[1]{0}', space=sflag, size = 0x4, scoped, tag = 'scoped memory for tpu_custom_call.1']
    %7 = vsyncpa [#allocation3], 0
    // Predicated region
    $region2: #{tpu_custom_call.1} parent=1 // pred_check
      _
    $region3: #{tpu_custom_call.1} parent=1 // pred_check_branch
      %9 = sbr.rel (0) target = $region5
    $region4: #{tpu_custom_call.1} parent=1 // pred_region
      _
    $region5: #{tpu_custom_call.1} parent=1 // pred_fallthru
      _
    // Predicated region
    $region6: #{tpu_custom_call.1} parent=1 // pred_check
      _
    $region7: #{tpu_custom_call.1} parent=1 // pred_check_branch
      %11 = sbr.rel (0) target = $region9
    $region8: #{tpu_custom_call.1} parent=1 // pred_region
      _
    $region9: #{tpu_custom_call.1} parent=1 // pred_fallthru
      _
    %v12 = vld [vmem:[%s0] sm:$0xff]
    %v13 = vld [vmem:[%s0 + $0x8] sm:$0xff]
    %v14 = vld [vmem:[%s1] sm:$0xff]
    %v15 = vld [vmem:[%s1 + $0x8] sm:$0xff]
    %v16 = vlaneseq
    %v17 = vshrl.u32 %v16, 7
    %v18 = vadd.s32 %v17, 8
    %s19 = smul.u32 0, 16
    %v20 = vstv %s19
    %v21 = vadd.s32 %v17, %v20
    %v22 = vadd.s32 %v18, %v20
    %vm23 = vcmp.lt.s32.totalorder %v21, 16
    %vm24 = vcmp.lt.s32.totalorder %v22, 16
    %vm25 = vcmask 261120
    %v26 = vsel %vm25, %v12, -inf
    %27 = vmax.xlane.f32.xlu0 %v26
    %v28 = vpop.xlane.xlu0 %27
    %v29 = vsel %vm25, %v13, -inf
    %30 = vmax.xlane.f32.xlu0 %v29
    %v31 = vpop.xlane.xlu0 %30
    %v32 = vsub.f32 %v12, %v28
    %v33 = vsub.f32 %v13, %v31
    %v34 = vmul.f32 %v32, 1.442695
    %v35 = vpow.pop %v34
    %v36 = vmul.f32 %v33, 1.442695
    %v37 = vpow.pop %v36
    %v38 = vsel %vm25, %v35, 0.0
    %39 = vadd.xlane.f32.xlu0 %v38
    %v40 = vpop.xlane.xlu0 %39
    %v41 = vsel %vm25, %v37, 0.0
    %42 = vadd.xlane.f32.xlu0 %v41
    %v43 = vpop.xlane.xlu0 %42
    %v44 = vlog2.pop %v40
    %v45 = vmul.f32 %v44, 0.6931472
    %v46 = vlog2.pop %v43
    %v47 = vmul.f32 %v46, 0.6931472
    %v48 = vsub.f32 %v32, %v45
    %v49 = vsub.f32 %v33, %v47
    %v50 = vrcp.pop %v40
    %v51 = vrcp.pop %v43
    %v52 = vmul.f32 %v35, %v50
    %v53 = vmul.f32 %v37, %v51
    %v54 = vlaneseq
    %v55 = vand.u32 %v54, 127
    %56 = vset.pattern.permute.xlu0 0
    %57 = vperm.xlu0 %56, %v14
    %v58 = vpop.permute.xlu0 %57
    %59 = vset.pattern.permute.xlu0 0
    %60 = vperm.xlu0 %59, %v15
    %v61 = vpop.permute.xlu0 %60
    %vm62 = vcmp.eq.s32.totalorder %v55, %v58
    %vm63 = vcmp.eq.s32.totalorder %v55, %v61
    %v64 = vsel %vm62, 1, 0
    %v65 = vsel %vm63, 1, 0
    %v66 = vcvt.s32.f32 %v64
    %v67 = vcvt.s32.f32 %v65
    %v68 = vmul.f32 %v66, 0.8
    %v69 = vmul.f32 %v67, 0.8
    %v70 = vmul.f32 %v52, 0.2
    %v71 = vmul.f32 %v53, 0.2
    %v72 = vadd.f32 %v68, %v70
    %v73 = vadd.f32 %v69, %v71
    %v74 = vsub.f32 0.0, %v72
    %v75 = vsub.f32 0.0, %v73
    %v76 = vmul.f32 %v74, %v48
    %v77 = vmul.f32 %v75, %v49
    %v78 = vsel %vm23, 1, 0
    %v79 = vsel %vm24, 1, 0
    %vm80 = vcmp.eq.s32.totalorder %v78, 1
    %vm81 = vcmp.eq.s32.totalorder %v79, 1
    %v82 = vsel %vm80, %v76, 0.0
    %v83 = vsel %vm81, %v77, 0.0
    %v84 = vsel %vm25, %v82, 0.0
    %v85 = vsel %vm25, %v83, 0.0
    %v86 = vadd.f32 %v84, %v85
    %v87 = vrot.slane %v86, 4
    %v88 = vadd.f32 %v86, %v87
    %v89 = vrot.slane %v88, 2
    %v90 = vadd.f32 %v88, %v89
    %v91 = vrot.slane %v90, 1
    %v92 = vadd.f32 %v90, %v91
    %vm93 = vcmask 253952
    %94 = vst.msk [vmem:[#allocation2] sm:$0x1] %vm93, %v92
    // Predicated region
    $region10: #{tpu_custom_call.1} parent=1 // pred_check
      _
    $region11: #{tpu_custom_call.1} parent=1 // pred_check_branch
      %96 = sbr.rel (0) target = $region13
    $region12: #{tpu_custom_call.1} parent=1 // pred_region
      %s98 = ssub.s32 16, 16
      %99 = vsyncadd [#allocation3], %s98
      %s101 = sshll.u32 [#allocation2], 4
      %s102 = int_to_ptr.vmem [resolvable:$true] %s101
      %104 = dma.vmem_to_hbm [thread:$0]  %s102, 16, %s2, [#allocation3]
    $region13: #{tpu_custom_call.1} parent=1 // pred_fallthru
      _
    // Predicated region
    $region14: #{tpu_custom_call.1} parent=1 // pred_check
      _
    $region15: #{tpu_custom_call.1} parent=1 // pred_check_branch
      %106 = sbr.rel (0) target = $region17
    $region16: #{tpu_custom_call.1} parent=1 // pred_region
      %107 = dma.done [#allocation3], 16
    $region17: #{tpu_custom_call.1} parent=1 // pred_fallthru
      _
    %108 = vsyncpa [#allocation3], 1

</llo_original>
